<compile_context>
chip_gen: v7x
topology: tpu7x:2x2x1
jax: 0.10.0
libtpu: 0.0.40
codegen_flags: <defaults>
</compile_context>

<pallas_src>
import numpy as np
import jax
import jax.numpy as jnp
from jax.experimental import pallas as pl
from jax.experimental.pallas import tpu as pltpu


# ------------------------------ Pallas kernel ---------------------------------

def _mrconv_fused_kernel(x_ref, nmax_ref, w1_ref, w2_ref, b_ref, o_ref):
    """Fused max-relative conv for one node tile.

    x_ref   : [C, TN]   bf16  node features (channels on sublanes, nodes on lanes)
    nmax_ref: [C, TN]   bf16  pre-reduced K-way neighbor max of those nodes
    w1_ref  : [Cout, C] bf16  (Wx - Wa): acts on x   (agg = nmax - x folded in)
    w2_ref  : [Cout, C] bf16  Wa       : acts on nmax
    b_ref   : [Cout, 1] f32   bias
    o_ref   : [Cout, TN] bf16 output tile (lane-dense, unmasked stores)
    """
    acc = jnp.dot(w1_ref[...], x_ref[...], preferred_element_type=jnp.float32)
    acc = acc + jnp.dot(w2_ref[...], nmax_ref[...], preferred_element_type=jnp.float32)
    acc = acc + b_ref[...]                                # [Cout, 1] lane-broadcast
    o_ref[...] = jnp.maximum(acc, 0.0).astype(o_ref.dtype)


# -------------------------------- helpers --------------------------------------

def _pick_tile_n(BN, C, Cout):
    """Largest node-tile width whose double-buffered footprint stays well inside the
    scoped-VMEM limit on every generation (incl. v7x's 64 MiB physical VMEM) and
    that still leaves >= 4 grid steps so both v7x TensorCores get several tiles."""
    def rows16(r):                      # bf16 sublane tile padding
        return ((r + 15) // 16) * 16
    for tn in (1024, 512, 256):
        # 2 streamed inputs + 1 output, 2 buffers each, bf16
        vmem_bytes = (2 * 2 * rows16(C) + 2 * rows16(Cout)) * tn * 2
        if BN >= 4 * tn and vmem_bytes <= 24 * 1024 * 1024:
            return tn
    return 128


def check_dense_edge_index(edge_index, BN, K):
    """Cheap host-side check of the dense fixed-K, grouped-by-target layout that
    mrconv2d_forward relies on (edge_index[0][i*K + k] == i)."""
    src = np.asarray(edge_index[0]).reshape(BN, K)
    assert (src == np.arange(BN, dtype=src.dtype)[:, None]).all(), (
        "mrconv2d_forward requires a dense fixed-K edge_index grouped by target node")


# -------------------------------- wrapper --------------------------------------

def mrconv2d_forward(x, edge_index, weight, bias):
    """x: [B, C, N, 1] float16, edge_index: [2, B*N*K] int32 (dense fixed-K, grouped
    by target node), weight: [Cout, 2C] float16 (squeezed 1x1 conv kernel),
    bias: [Cout] float16.  Returns [B, Cout, N, 1] float16."""
    B, C, N, W1 = x.shape
    assert W1 == 1
    Cout = weight.shape[0]
    BN = B * N
    E = edge_index.shape[1]
    assert E % BN == 0, "dense MRConv2d expects a fixed-K neighbor structure"
    K = E // BN

    # [C, BN] with node order b*N + n, matching the torch permute/reshape chain.
    xT = jnp.transpose(x[..., 0], (1, 0, 2)).reshape(C, BN).astype(jnp.bfloat16)

    # Dense fixed-K neighbor table: edge i*K + k targets node i and reads node nbr[i, k].
    nbr = edge_index[1].astype(jnp.int32).reshape(BN, K)

    # Pre-reduced K-way neighbor max (max is exact in bf16).  XLA fuses the gather
    # with the reduction, so the [C, BN, K] gathered tensor never hits HBM and the
    # kernel only reads 2*C*BN bf16 instead of (K+1)*C*BN.
    # TODO(synk): the irregular per-node gather stays in XLA; a data-dependent
    # lane-axis gather has no cheap Pallas TPU equivalent.
    nmaxT = jnp.max(xT[:, nbr], axis=-1)                              # bf16 [C, BN]

    # Node-tile width, then pad the lane axis to a multiple of it so the tile size
    # never falls back to 128 on awkward node counts.
    TN = _pick_tile_n(BN, C, Cout)
    BNp = -(-BN // TN) * TN
    if BNp != BN:
        xT = jnp.pad(xT, ((0, 0), (0, BNp - BN)))
        nmaxT = jnp.pad(nmaxT, ((0, 0), (0, BNp - BN)))
    grid = (BNp // TN,)

    # De-interleave the conv weight (torch input channel 2c <- x[c], 2c+1 <- agg[c])
    # and fold the max-relative subtraction into it:
    #   Wx @ x + Wa @ (nmax - x) == (Wx - Wa) @ x + Wa @ nmax
    w = weight.astype(jnp.float32)
    wx = w[:, 0::2]
    wa = w[:, 1::2]
    w1 = (wx - wa).astype(jnp.bfloat16)                               # [Cout, C]
    w2 = wa.astype(jnp.bfloat16)                                      # [Cout, C]
    b2d = bias.astype(jnp.float32).reshape(Cout, 1)

    out = pl.pallas_call(
        _mrconv_fused_kernel,
        out_shape=jax.ShapeDtypeStruct((Cout, BNp), jnp.bfloat16),
        grid=grid,
        in_specs=[
            pl.BlockSpec((C, TN), lambda i: (0, i)),
            pl.BlockSpec((C, TN), lambda i: (0, i)),
            pl.BlockSpec((Cout, C), lambda i: (0, 0)),
            pl.BlockSpec((Cout, C), lambda i: (0, 0)),
            pl.BlockSpec((Cout, 1), lambda i: (0, 0)),
        ],
        out_specs=pl.BlockSpec((Cout, TN), lambda i: (0, i)),
        compiler_params=pltpu.CompilerParams(
            dimension_semantics=("parallel",),
            vmem_limit_bytes=32 * 1024 * 1024,
        ),
    )(xT, nmaxT, w1, w2, b2d)

    # The f16 cast fuses with this (required) output transpose in XLA, so it is free.
    out = out[:, :BN].astype(jnp.float16)                             # [Cout, BN]
    return jnp.transpose(out.reshape(Cout, B, N), (1, 0, 2))[..., None]


# ------------------------------- reference -------------------------------------

def mrconv2d_reference(x, edge_index, weight, bias):
    """Pure-JAX mirror of the torch forward (fp16 diffs, f32 scatter-max, fp16 cast,
    f32 conv), used only for the correctness check."""
    B, C, N, _ = x.shape
    Cout = weight.shape[0]
    BN = B * N
    x_flat = jnp.transpose(x[..., 0], (0, 2, 1)).reshape(BN, C)       # f16 [BN, C]
    xi = x_flat[edge_index[0]]
    xj = x_flat[edge_index[1]]
    diff = (xj - xi).astype(jnp.float32)                              # fp16 sub, f32 scatter
    seg = jax.ops.segment_max(diff, edge_index[0], num_segments=BN)
    seg = jnp.where(jnp.isneginf(seg), 0.0, seg)                      # untouched rows -> 0
    agg = seg.astype(jnp.float16).astype(jnp.float32)
    w = weight.astype(jnp.float32)
    wx = jnp.transpose(w[:, 0::2])                                    # [C, Cout]
    wa = jnp.transpose(w[:, 1::2])
    out = jnp.maximum(x_flat.astype(jnp.float32) @ wx + agg @ wa
                      + bias.astype(jnp.float32)[None, :], 0.0).astype(jnp.float16)
    return jnp.transpose(out.reshape(B, N, Cout), (0, 2, 1))[..., None]


# ---------------------------------- main ----------------------------------------

if __name__ == "__main__":
    B, C, N, Cout, K = 2, 4, 128, 8, 8
    BN = B * N

    key = jax.random.PRNGKey(0)
    kx, kw, kb = jax.random.split(key, 3)

    x = jax.random.normal(kx, (B, C, N, 1), dtype=jnp.float32).astype(jnp.float16)
    weight = (0.1 * jax.random.normal(kw, (Cout, 2 * C), dtype=jnp.float32)).astype(jnp.float16)
    bias = (0.1 * jax.random.normal(kb, (Cout,), dtype=jnp.float32)).astype(jnp.float16)

    # deterministic ring graph: node i = b*N + n has K neighbors (b, (n+d) % N), d = 0..K-1
    # (fixed-K, grouped by target node -> the dense KNN edge format MRConv2d is used with)
    node = jnp.arange(BN, dtype=jnp.int32)
    b_of, n_of = node // N, node % N
    offs = jnp.arange(K, dtype=jnp.int32)
    dst = (b_of[:, None] * N + (n_of[:, None] + offs[None, :]) % N).reshape(-1)
    src = jnp.repeat(node, K)
    edge_index = jnp.stack([src, dst]).astype(jnp.int32)              # [2, E], E = BN*K

    # host-side check of the load-bearing dense-K assumption
    check_dense_edge_index(edge_index, BN, K)

    fwd = jax.jit(mrconv2d_forward)
    out = fwd(x, edge_index, weight, bias)
    jax.block_until_ready(out)

    ref = mrconv2d_reference(x, edge_index, weight, bias)
    assert out.shape == (B, Cout, N, 1) and out.dtype == jnp.float16
    # kernel runs the conv on bf16 operands (native MXU path); the reference is f32
    # over the fp16 torch math, so allow bf16-level tolerance.
    assert jnp.allclose(out.astype(jnp.float32), ref.astype(jnp.float32),
                        atol=3e-2, rtol=3e-2)

    print("KERNEL_OK")
</pallas_src>

<mosaic_0001>
module attributes {stable_mosaic.version = 11 : i64} {
  func.func @_mrconv_fused_kernel(%arg0: i32, %arg1: memref<4x128xbf16, #tpu.memory_space<vmem>>, %arg2: memref<4x128xbf16, #tpu.memory_space<vmem>>, %arg3: memref<8x4xbf16, #tpu.memory_space<vmem>>, %arg4: memref<8x4xbf16, #tpu.memory_space<vmem>>, %arg5: memref<8x1xf32, #tpu.memory_space<vmem>>, %arg6: memref<8x128xbf16, #tpu.memory_space<vmem>>) attributes {dimension_semantics = [#tpu.dimension_semantics<parallel>], iteration_bounds = array<i64: 2>, scalar_prefetch = 0 : i64, scratch_operands = 0 : i64, tpu.core_type = #tpu.core_type<tc>, window_params = [{transform_indices = @transform_0, window_bounds = array<i64: 4, 128>}, {transform_indices = @transform_1, window_bounds = array<i64: 4, 128>}, {pipeline_mode = #tpu.pipeline_mode<synchronous>, transform_indices = @transform_2, window_bounds = array<i64: 8, 4>}, {pipeline_mode = #tpu.pipeline_mode<synchronous>, transform_indices = @transform_3, window_bounds = array<i64: 8, 4>}, {pipeline_mode = #tpu.pipeline_mode<synchronous>, transform_indices = @transform_4, window_bounds = array<i64: 8, 1>}, {transform_indices = @transform_5, window_bounds = array<i64: 8, 128>}]} {
    %c0 = arith.constant 0 : index
    %c0_0 = arith.constant 0 : index
    %0 = vector.load %arg3[%c0, %c0_0] : memref<8x4xbf16, #tpu.memory_space<vmem>>, vector<8x4xbf16>
    %c0_1 = arith.constant 0 : index
    %c0_2 = arith.constant 0 : index
    %1 = vector.load %arg1[%c0_1, %c0_2] : memref<4x128xbf16, #tpu.memory_space<vmem>>, vector<4x128xbf16>
    %cst = arith.constant dense<0.000000e+00> : vector<8x128xf32>
    %2 = tpu.matmul %0, %1, %cst {dimension_numbers = #tpu.dot_dimension_numbers<[1], [0], [0], [1], [0, 0, 1, 1], [], []>} : vector<8x4xbf16>, vector<4x128xbf16>, vector<8x128xf32> -> vector<8x128xf32>
    %c0_3 = arith.constant 0 : index
    %c0_4 = arith.constant 0 : index
    %3 = vector.load %arg4[%c0_3, %c0_4] : memref<8x4xbf16, #tpu.memory_space<vmem>>, vector<8x4xbf16>
    %c0_5 = arith.constant 0 : index
    %c0_6 = arith.constant 0 : index
    %4 = vector.load %arg2[%c0_5, %c0_6] : memref<4x128xbf16, #tpu.memory_space<vmem>>, vector<4x128xbf16>
    %cst_7 = arith.constant dense<0.000000e+00> : vector<8x128xf32>
    %5 = tpu.matmul %3, %4, %cst_7 {dimension_numbers = #tpu.dot_dimension_numbers<[1], [0], [0], [1], [0, 0, 1, 1], [], []>} : vector<8x4xbf16>, vector<4x128xbf16>, vector<8x128xf32> -> vector<8x128xf32>
    %6 = arith.addf %2, %5 : vector<8x128xf32>
    %c0_8 = arith.constant 0 : index
    %c0_9 = arith.constant 0 : index
    %7 = vector.load %arg5[%c0_8, %c0_9] : memref<8x1xf32, #tpu.memory_space<vmem>>, vector<8x1xf32>
    %8 = vector.broadcast %7 : vector<8x1xf32> to vector<8x128xf32>
    %9 = arith.addf %6, %8 : vector<8x128xf32>
    %cst_10 = arith.constant 0.000000e+00 : f32
    %10 = vector.broadcast %cst_10 : f32 to vector<8x128xf32>
    %11 = arith.maximumf %9, %10 : vector<8x128xf32>
    %12 = arith.truncf %11 : vector<8x128xf32> to vector<8x128xbf16>
    %c0_11 = arith.constant 0 : index
    %c0_12 = arith.constant 0 : index
    %13 = vector.load %arg6[%c0_11, %c0_12] : memref<8x128xbf16, #tpu.memory_space<vmem>>, vector<8x128xbf16>
    tpu.vector_store %arg6[%c0_11, %c0_12], %12 {strides = array<i32>} : memref<8x128xbf16, #tpu.memory_space<vmem>>, vector<8x128xbf16>,
    return
  }
  func.func @transform_0(%arg0: i32) -> (i32, i32) {
    %c0_i32 = arith.constant 0 : i32
    %c0_i32_0 = arith.constant 0 : i32
    return %c0_i32, %arg0 : i32, i32
  }
  func.func @transform_1(%arg0: i32) -> (i32, i32) {
    %c0_i32 = arith.constant 0 : i32
    %c0_i32_0 = arith.constant 0 : i32
    return %c0_i32, %arg0 : i32, i32
  }
  func.func @transform_2(%arg0: i32) -> (i32, i32) {
    %c0_i32 = arith.constant 0 : i32
    %c0_i32_0 = arith.constant 0 : i32
    %c0_i32_1 = arith.constant 0 : i32
    return %c0_i32, %c0_i32_0 : i32, i32
  }
  func.func @transform_3(%arg0: i32) -> (i32, i32) {
    %c0_i32 = arith.constant 0 : i32
    %c0_i32_0 = arith.constant 0 : i32
    %c0_i32_1 = arith.constant 0 : i32
    return %c0_i32, %c0_i32_0 : i32, i32
  }
  func.func @transform_4(%arg0: i32) -> (i32, i32) {
    %c0_i32 = arith.constant 0 : i32
    %c0_i32_0 = arith.constant 0 : i32
    %c0_i32_1 = arith.constant 0 : i32
    return %c0_i32, %c0_i32_0 : i32, i32
  }
  func.func @transform_5(%arg0: i32) -> (i32, i32) {
    %c0_i32 = arith.constant 0 : i32
    %c0_i32_0 = arith.constant 0 : i32
    return %c0_i32, %arg0 : i32, i32
  }
}

</mosaic_0001>

<llo_original>
// kernel: mrconv2d_forward.1
$region0: #{mrconv2d_forward.1}
  #allocation0 [shape = 'u32[]', space=smem, size = 0x4, offset = 0x4, fixed_abs, tag = 'smem constant byte address 0x4 - core index']
  #allocation1 [shape = 'u32[144,128]{1,0:T(1,128)}', space=vmem, size = 0x12000, scoped, tag = 'internal scratch']
  %s0 = inlined_call_operand.vmem [shape: bf16[4,256], index: 0, kind: input, shape index: {}]
  %s1 = inlined_call_operand.vmem [shape: bf16[4,256], index: 1, kind: input, shape index: {}]
  %s2 = inlined_call_operand.vmem [shape: bf16[8,4], index: 2, kind: input, shape index: {}]
  %s3 = inlined_call_operand.vmem [shape: bf16[8,4], index: 3, kind: input, shape index: {}]
  %s4 = inlined_call_operand.vmem [shape: f32[8,1], index: 4, kind: input, shape index: {}]
  %s5 = inlined_call_operand.vmem [shape: bf16[8,256], index: 5, kind: output, shape index: {}]
  %s6 = sld [smem:[#allocation0]]
  $region53: #{mrconv2d_forward.1} parent=0
    _
  %s8 = ssub.s32 1, %s6
  %s9 = scalar_select 0, %s8, %s6
  loop: start=0, step=1, limit=4
  $region2: #{mrconv2d_forward.1} parent=0 // loop_pre_header
    _
  $region3: #{mrconv2d_forward.1} parent=0 // loop_header
    %s11 = sphi 0, %s15
    %p12 = scmp.ge.s32.totalorder %s11, 4
    %s21 = sphi 0, %s23
    %s24 = sphi 0, %s21
    %s25 = sphi 0, %s24
    %s41 = sphi 0, %s25
    %s47 = sphi 0, %s49
    %s50 = sphi 0, %s47
    %s51 = sphi 0, %s50
    %s67 = sphi 0, %s51
    %s71 = sphi 0, %s71
    %s73 = sphi 0, %s71
    %s74 = sphi 0, %s73
    %s88 = sphi 0, %s74
    %s92 = sphi 0, %s92
    %s94 = sphi 0, %s92
    %s95 = sphi 0, %s94
    %s109 = sphi 0, %s95
    %s113 = sphi 0, %s113
    %s115 = sphi 0, %s113
    %s116 = sphi 0, %s115
    %s130 = sphi 0, %s116
    %s136 = sphi 0, %s138
    %s139 = sphi 0, %s136
    %s140 = sphi 0, %s139
    %s156 = sphi 0, %s140
  $region4: #{mrconv2d_forward.1} parent=0 // loop_header_branch
    %14 = sbr.rel (%p12) target = $region8
  $region5: #{mrconv2d_forward.1} parent=0 // loop_body
    %s16 = ssub.s32 %s11, 1
    %s17 = ssub.s32 %s11, 2
    %s18 = sadd.s32 %s11, 1
    %s19 = ssub.s32 %s11, %s18
    %p20 = scmp.eq.s32.totalorder %s19, 0
    %s22 = sadd.s32 %s21, 1
    %s23 = scalar_select %p20, %s21, %s22
    %p26 = pneg %p20
    %p27 = scmp.eq.s32.totalorder %s11, 1
    %p28 = por %p26, %p27
    %p29 = scmp.ne.s32.totalorder %s21, %s24
    %p30 = scmp.eq.s32.totalorder %s11, 0
    %p31 = por %p29, %p30
    %p32 = scmp.ne.s32.totalorder %s21, %s24
    %p33 = scmp.eq.s32.totalorder %s16, 1
    %p34 = por %p32, %p33
    %p35 = scmp.ne.s32.totalorder %s24, %s25
    %p36 = scmp.eq.s32.totalorder %s16, 0
    %p37 = por %p35, %p36
    %p38 = scmp.ne.s32.totalorder %s24, %s25
    %p39 = scmp.eq.s32.totalorder %s17, 1
    %p40 = por %p38, %p39
    %p42 = scmp.ne.s32.totalorder %s25, %s41
    %p43 = scmp.eq.s32.totalorder %s17, 0
    %p44 = por %p42, %p43
    %s45 = ssub.s32 %s11, %s18
    %p46 = scmp.eq.s32.totalorder %s45, 0
    %s48 = sadd.s32 %s47, 1
    %s49 = scalar_select %p46, %s47, %s48
    %p52 = pneg %p46
    %p53 = scmp.eq.s32.totalorder %s11, 1
    %p54 = por %p52, %p53
    %p55 = scmp.ne.s32.totalorder %s47, %s50
    %p56 = scmp.eq.s32.totalorder %s11, 0
    %p57 = por %p55, %p56
    %p58 = scmp.ne.s32.totalorder %s47, %s50
    %p59 = scmp.eq.s32.totalorder %s16, 1
    %p60 = por %p58, %p59
    %p61 = scmp.ne.s32.totalorder %s50, %s51
    %p62 = scmp.eq.s32.totalorder %s16, 0
    %p63 = por %p61, %p62
    %p64 = scmp.ne.s32.totalorder %s50, %s51
    %p65 = scmp.eq.s32.totalorder %s17, 1
    %p66 = por %p64, %p65
    %p68 = scmp.ne.s32.totalorder %s51, %s67
    %p69 = scmp.eq.s32.totalorder %s17, 0
    %p70 = por %p68, %p69
    %s72 = sadd.s32 %s71, 1
    %p75 = scmp.eq.s32.totalorder %s11, 1
    %p76 = scmp.ne.s32.totalorder %s71, %s73
    %p77 = scmp.eq.s32.totalorder %s11, 0
    %p78 = por %p76, %p77
    %p79 = scmp.ne.s32.totalorder %s71, %s73
    %p80 = scmp.eq.s32.totalorder %s16, 1
    %p81 = por %p79, %p80
    %p82 = scmp.ne.s32.totalorder %s73, %s74
    %p83 = scmp.eq.s32.totalorder %s16, 0
    %p84 = por %p82, %p83
    %p85 = scmp.ne.s32.totalorder %s73, %s74
    %p86 = scmp.eq.s32.totalorder %s17, 1
    %p87 = por %p85, %p86
    %p89 = scmp.ne.s32.totalorder %s74, %s88
    %p90 = scmp.eq.s32.totalorder %s17, 0
    %p91 = por %p89, %p90
    %s93 = sadd.s32 %s92, 1
    %p96 = scmp.eq.s32.totalorder %s11, 1
    %p97 = scmp.ne.s32.totalorder %s92, %s94
    %p98 = scmp.eq.s32.totalorder %s11, 0
    %p99 = por %p97, %p98
    %p100 = scmp.ne.s32.totalorder %s92, %s94
    %p101 = scmp.eq.s32.totalorder %s16, 1
    %p102 = por %p100, %p101
    %p103 = scmp.ne.s32.totalorder %s94, %s95
    %p104 = scmp.eq.s32.totalorder %s16, 0
    %p105 = por %p103, %p104
    %p106 = scmp.ne.s32.totalorder %s94, %s95
    %p107 = scmp.eq.s32.totalorder %s17, 1
    %p108 = por %p106, %p107
    %p110 = scmp.ne.s32.totalorder %s95, %s109
    %p111 = scmp.eq.s32.totalorder %s17, 0
    %p112 = por %p110, %p111
    %s114 = sadd.s32 %s113, 1
    %p117 = scmp.eq.s32.totalorder %s11, 1
    %p118 = scmp.ne.s32.totalorder %s113, %s115
    %p119 = scmp.eq.s32.totalorder %s11, 0
    %p120 = por %p118, %p119
    %p121 = scmp.ne.s32.totalorder %s113, %s115
    %p122 = scmp.eq.s32.totalorder %s16, 1
    %p123 = por %p121, %p122
    %p124 = scmp.ne.s32.totalorder %s115, %s116
    %p125 = scmp.eq.s32.totalorder %s16, 0
    %p126 = por %p124, %p125
    %p127 = scmp.ne.s32.totalorder %s115, %s116
    %p128 = scmp.eq.s32.totalorder %s17, 1
    %p129 = por %p127, %p128
    %p131 = scmp.ne.s32.totalorder %s116, %s130
    %p132 = scmp.eq.s32.totalorder %s17, 0
    %p133 = por %p131, %p132
    %s134 = ssub.s32 %s11, %s18
    %p135 = scmp.eq.s32.totalorder %s134, 0
    %s137 = sadd.s32 %s136, 1
    %s138 = scalar_select %p135, %s136, %s137
    %p141 = pneg %p135
    %p142 = scmp.eq.s32.totalorder %s11, 1
    %p143 = por %p141, %p142
    %p144 = scmp.ne.s32.totalorder %s136, %s139
    %p145 = scmp.eq.s32.totalorder %s11, 0
    %p146 = por %p144, %p145
    %p147 = scmp.ne.s32.totalorder %s136, %s139
    %p148 = scmp.eq.s32.totalorder %s16, 1
    %p149 = por %p147, %p148
    %p150 = scmp.ne.s32.totalorder %s139, %s140
    %p151 = scmp.eq.s32.totalorder %s16, 0
    %p152 = por %p150, %p151
    %p153 = scmp.ne.s32.totalorder %s139, %s140
    %p154 = scmp.eq.s32.totalorder %s17, 1
    %p155 = por %p153, %p154
    %p157 = scmp.ne.s32.totalorder %s140, %s156
    %p158 = scmp.eq.s32.totalorder %s17, 0
    %p159 = por %p157, %p158
    %p160 = scmp.le.s32.totalorder 1, %s11
    %p161 = scmp.lt.s32.totalorder %s11, 3
    %p162 = pnand %p160, %p161
    %p163 = pneg %p162
    // Predicated region
    $region9: #{mrconv2d_forward.1} parent=5 // pred_check
      _
    $region10: #{mrconv2d_forward.1} parent=5 // pred_check_branch
      %165 = sbr.rel (%p162) target = $region12
    $region11: #{mrconv2d_forward.1} parent=5 // pred_region
      %s166 = ssub.s32 %s11, 1
      // Predicated region
      $region13: #{mrconv2d_forward.1} parent=11 // pred_check
        %p167 = pneg %p84
      $region14: #{mrconv2d_forward.1} parent=11 // pred_check_branch
        %169 = sbr.rel (%p167) target = $region16
      $region15: #{mrconv2d_forward.1} parent=11 // pred_region
        _
      $region16: #{mrconv2d_forward.1} parent=11 // pred_fallthru
        _
      // Predicated region
      $region17: #{mrconv2d_forward.1} parent=11 // pred_check
        %p170 = pneg %p105
      $region18: #{mrconv2d_forward.1} parent=11 // pred_check_branch
        %172 = sbr.rel (%p170) target = $region20
      $region19: #{mrconv2d_forward.1} parent=11 // pred_region
        _
      $region20: #{mrconv2d_forward.1} parent=11 // pred_fallthru
        _
      // Predicated region
      $region21: #{mrconv2d_forward.1} parent=11 // pred_check
        %p173 = pneg %p126
      $region22: #{mrconv2d_forward.1} parent=11 // pred_check_branch
        %175 = sbr.rel (%p173) target = $region24
      $region23: #{mrconv2d_forward.1} parent=11 // pred_region
        _
      $region24: #{mrconv2d_forward.1} parent=11 // pred_fallthru
        _
    $region12: #{mrconv2d_forward.1} parent=5 // pred_fallthru
      _
    %p176 = scmp.lt.s32.totalorder %s11, 2
    // Predicated region
    $region25: #{mrconv2d_forward.1} parent=5 // pred_check
      %p177 = pneg %p176
    $region26: #{mrconv2d_forward.1} parent=5 // pred_check_branch
      %179 = sbr.rel (%p177) target = $region28
    $region27: #{mrconv2d_forward.1} parent=5 // pred_region
      // Predicated region
      $region29: #{mrconv2d_forward.1} parent=27 // pred_check
        %p180 = pneg %p31
      $region30: #{mrconv2d_forward.1} parent=27 // pred_check_branch
        %182 = sbr.rel (%p180) target = $region32
      $region31: #{mrconv2d_forward.1} parent=27 // pred_region
        %p183 = scmp.lt.s32.totalorder %s11, 1
        %s184 = scalar_select %p183, %s11, 1
        %s185 = smul.addr %s184, 2
        %s186 = scalar_lea.vmem %s0, %s185
      $region32: #{mrconv2d_forward.1} parent=27 // pred_fallthru
        _
      // Predicated region
      $region33: #{mrconv2d_forward.1} parent=27 // pred_check
        %p187 = pneg %p57
      $region34: #{mrconv2d_forward.1} parent=27 // pred_check_branch
        %189 = sbr.rel (%p187) target = $region36
      $region35: #{mrconv2d_forward.1} parent=27 // pred_region
        %p190 = scmp.lt.s32.totalorder %s11, 1
        %s191 = scalar_select %p190, %s11, 1
        %s192 = smul.addr %s191, 2
        %s193 = scalar_lea.vmem %s1, %s192
      $region36: #{mrconv2d_forward.1} parent=27 // pred_fallthru
        _
    $region28: #{mrconv2d_forward.1} parent=5 // pred_fallthru
      _
    %p194 = scmp.le.s32.totalorder 1, %s11
    %p195 = scmp.lt.s32.totalorder %s11, 3
    %p196 = pnand %p194, %p195
    %p197 = pneg %p196
    // Predicated region
    $region37: #{mrconv2d_forward.1} parent=5 // pred_check
      _
    $region38: #{mrconv2d_forward.1} parent=5 // pred_check_branch
      %199 = sbr.rel (%p196) target = $region40
    $region39: #{mrconv2d_forward.1} parent=5 // pred_region
      %s200 = ssub.s32 %s11, 1
      %p201 = scmp.lt.s32.totalorder %s16, 1
      %s202 = scalar_select %p201, %s16, 1
      %s203 = smul.addr %s202, 2
      %s204 = scalar_lea.vmem %s0, %s203
      %p205 = pneg %p37
      %p206 = pneg %p34
      %p207 = scmp.lt.s32.totalorder %s16, 1
      %s208 = scalar_select %p207, %s16, 1
      %s209 = smul.addr %s208, 2
      %s210 = scalar_lea.vmem %s1, %s209
      %p211 = pneg %p63
      %p212 = pneg %p60
      %p213 = pneg %p84
      %p214 = pneg %p81
      %p215 = pneg %p105
      %p216 = pneg %p102
      %p217 = pneg %p126
      %p218 = pneg %p123
      %p219 = pneg %p152
      %p220 = pneg %p149
      %p221 = scmp.lt.s32.totalorder %s16, 1
      %s222 = scalar_select %p221, %s16, 1
      %s223 = smul.addr %s222, 4
      %s224 = scalar_lea.vmem %s5, %s223
      %p225 = scmp.lt.s32.totalorder %s16, 1
      %s226 = scalar_select %p225, %s16, 1
      %s227 = smul.addr %s226, 2
      %s228 = scalar_lea.vmem %s0, %s227
      %p229 = scmp.lt.s32.totalorder %s16, 1
      %s230 = scalar_select %p229, %s16, 1
      %s231 = smul.addr %s230, 2
      %s232 = scalar_lea.vmem %s1, %s231
      %p233 = scmp.lt.s32.totalorder %s16, 1
      %s234 = scalar_select %p233, %s16, 1
      %s235 = smul.addr %s234, 4
      %s236 = scalar_lea.vmem %s5, %s235
      %v238 = vld [vmem:[%s2] sm:$0xf]
      %v239 = vld [vmem:[%s228] sm:$0x3]
      %v240 = vld [vmem:[%s3] sm:$0xf]
      %v241 = vld [vmem:[%s232] sm:$0x3]
      %vm242 = vcmask 31744
      %v244 = vsel %vm242, %v240, 0
      %vm246 = vcmask 1041408
      %v248 = vsel %vm246, %v241, 0
      %250 = vmatprep.subr.bf16.mxu0 0
      %251 = vmatpush1.bf16.msra.mxu0 %v248
      %252 = vmatprep.subr.bf16.mxu0 0
      %253 = vmatpush1.bf16.msra.mxu0 0
      %254 = vmatprep.subr.bf16.mxu0 0
      %255 = vmatpush1.bf16.msra.mxu0 0
      %256 = vmatprep.subr.bf16.mxu0 0
      %257 = vmatpush1.bf16.msra.mxu0 0
      %258 = vmatprep.subr.bf16.mxu0 0
      %259 = vmatpush1.bf16.msra.mxu0 0
      %260 = vmatprep.subr.bf16.mxu0 0
      %261 = vmatpush1.bf16.msra.mxu0 0
      %262 = vmatprep.subr.bf16.mxu0 0
      %263 = vmatpush1.bf16.msra.mxu0 0
      %264 = vmatprep.subr.bf16.mxu0 0
      %265 = vmatpush1.bf16.msra.mxu0 0
      %266 = vmatprep.subr.bf16.mxu0 0
      %267 = vmatpush1.bf16.msra.mxu0 0
      %268 = vmatprep.subr.bf16.mxu0 0
      %269 = vmatpush1.bf16.msra.mxu0 0
      %270 = vmatprep.subr.bf16.mxu0 0
      %271 = vmatpush1.bf16.msra.mxu0 0
      %272 = vmatprep.subr.bf16.mxu0 0
      %273 = vmatpush1.bf16.msra.mxu0 0
      %274 = vmatprep.subr.bf16.mxu0 0
      %275 = vmatpush1.bf16.msra.mxu0 0
      %276 = vmatprep.subr.bf16.mxu0 0
      %277 = vmatpush1.bf16.msra.mxu0 0
      %278 = vmatprep.subr.bf16.mxu0 0
      %279 = vmatpush1.bf16.msra.mxu0 0
      %280 = vmatprep.subr.bf16.mxu0 0
      %281 = vmatpush1.bf16.msra.mxu0 0
      %282 = vmatprep.mubr.bf16.mxu0 0
      %283 = vmatmul.mubr.bf16.gmra.mrb[0].mxu0 %v244
      %v284 = vpop.f32.mrb[0].mxu0
      %v285 = vadd.f32 0.0, %v284
      %v286 = vpop.f32.mrb[0].mxu0
      %v287 = vpop.f32.mrb[0].mxu0
      %v288 = vpop.f32.mrb[0].mxu0
      %289 = vdwg.mxu0
      %v291 = vsel %vm242, %v238, 0
      %v294 = vsel %vm246, %v239, 0
      %296 = vmatprep.subr.bf16.mxu0 0
      %297 = vmatpush1.bf16.msra.mxu0 %v294
      %298 = vmatprep.subr.bf16.mxu0 0
      %299 = vmatpush1.bf16.msra.mxu0 0
      %300 = vmatprep.subr.bf16.mxu0 0
      %301 = vmatpush1.bf16.msra.mxu0 0
      %302 = vmatprep.subr.bf16.mxu0 0
      %303 = vmatpush1.bf16.msra.mxu0 0
      %304 = vmatprep.subr.bf16.mxu0 0
      %305 = vmatpush1.bf16.msra.mxu0 0
      %306 = vmatprep.subr.bf16.mxu0 0
      %307 = vmatpush1.bf16.msra.mxu0 0
      %308 = vmatprep.subr.bf16.mxu0 0
      %309 = vmatpush1.bf16.msra.mxu0 0
      %310 = vmatprep.subr.bf16.mxu0 0
      %311 = vmatpush1.bf16.msra.mxu0 0
      %312 = vmatprep.subr.bf16.mxu0 0
      %313 = vmatpush1.bf16.msra.mxu0 0
      %314 = vmatprep.subr.bf16.mxu0 0
      %315 = vmatpush1.bf16.msra.mxu0 0
      %316 = vmatprep.subr.bf16.mxu0 0
      %317 = vmatpush1.bf16.msra.mxu0 0
      %318 = vmatprep.subr.bf16.mxu0 0
      %319 = vmatpush1.bf16.msra.mxu0 0
      %320 = vmatprep.subr.bf16.mxu0 0
      %321 = vmatpush1.bf16.msra.mxu0 0
      %322 = vmatprep.subr.bf16.mxu0 0
      %323 = vmatpush1.bf16.msra.mxu0 0
      %324 = vmatprep.subr.bf16.mxu0 0
      %325 = vmatpush1.bf16.msra.mxu0 0
      %326 = vmatprep.subr.bf16.mxu0 0
      %327 = vmatpush1.bf16.msra.mxu0 0
      %328 = vmatprep.mubr.bf16.mxu0 0
      %329 = vmatmul.mubr.bf16.gmra.mrb[0].mxu0 %v291
      %v330 = vpop.f32.mrb[0].mxu0
      %v331 = vadd.f32 %v285, %v330
      %v332 = vpop.f32.mrb[0].mxu0
      %v333 = vpop.f32.mrb[0].mxu0
      %v334 = vpop.f32.mrb[0].mxu0
      %335 = vdwg.mxu0
      %v336 = vld [vmem:[%s4] sm:$0xff]
      %338 = vset.pattern.permute.xlu0 0
      %339 = vperm.xlu0 %338, %v336
      %v340 = vpop.permute.xlu0 %339
      %v342 = vadd.f32 %v331, %v340
      %v343 = vmax.f32 %v342, 0.0
      %v344 = vpack.c.bf16 %v343, %v343
      %345 = vst [vmem:[%s236] sm:$0xf] %v344
      %p346 = scmp.lt.s32.totalorder %s16, 1
      %s347 = scalar_select %p346, %s16, 1
      %s348 = smul.addr %s347, 4
      %s349 = scalar_lea.vmem %s5, %s348
      // Predicated region
      $region41: #{mrconv2d_forward.1} parent=39 // pred_check
        %p350 = pneg %p149
      $region42: #{mrconv2d_forward.1} parent=39 // pred_check_branch
        %352 = sbr.rel (%p350) target = $region44
      $region43: #{mrconv2d_forward.1} parent=39 // pred_region
        _
      $region44: #{mrconv2d_forward.1} parent=39 // pred_fallthru
        _
    $region40: #{mrconv2d_forward.1} parent=5 // pred_fallthru
      _
    %p353 = scmp.le.s32.totalorder 2, %s11
    // Predicated region
    $region45: #{mrconv2d_forward.1} parent=5 // pred_check
      %p354 = pneg %p353
    $region46: #{mrconv2d_forward.1} parent=5 // pred_check_branch
      %356 = sbr.rel (%p354) target = $region48
    $region47: #{mrconv2d_forward.1} parent=5 // pred_region
      %s357 = ssub.s32 %s11, 2
      // Predicated region
      $region49: #{mrconv2d_forward.1} parent=47 // pred_check
        %p358 = pneg %p155
      $region50: #{mrconv2d_forward.1} parent=47 // pred_check_branch
        %360 = sbr.rel (%p358) target = $region52
      $region51: #{mrconv2d_forward.1} parent=47 // pred_region
        %p361 = scmp.lt.s32.totalorder %s17, 1
        %s362 = scalar_select %p361, %s17, 1
        %s363 = smul.addr %s362, 4
        %s364 = scalar_lea.vmem %s5, %s363
      $region52: #{mrconv2d_forward.1} parent=47 // pred_fallthru
        _
    $region48: #{mrconv2d_forward.1} parent=5 // pred_fallthru
      _
  $region6: #{mrconv2d_forward.1} parent=0 // loop_footer
    %s15 = sadd.s32 1, %s11
  $region7: #{mrconv2d_forward.1} parent=0 // loop_footer_branch
    %10 = sbr.rel target = $region3
  $region8: #{mrconv2d_forward.1} parent=0 // loop_exit
    _

</llo_original>
